<compile_context>
chip_gen: v5e
topology: v5e:2x2
jax: 0.10.0
libtpu: 0.0.40
codegen_flags: <defaults>
</compile_context>

<pallas_src>
import functools

import jax
import jax.numpy as jnp
from jax.experimental import pallas as pl
from jax.experimental.pallas import tpu as pltpu


def _silu(v):
    # v * sigmoid(v) == v / (1 + exp(-v));  exp on EUP, div on VPU.
    return v / (1.0 + jnp.exp(-v))


def _row_stats(v, pix, hw):
    """Per-row mean, centered values and unbiased variance over the HW real pixels.

    `pix` is a (1, HWp) 0/1 mask of real pixels (None when HWp == HW)."""
    if pix is None:
        m = jnp.mean(v, axis=1, keepdims=True)
        d = v - m
        var = jnp.sum(d * d, axis=1, keepdims=True) * (1.0 / (hw - 1))
    else:
        m = jnp.sum(v * pix, axis=1, keepdims=True) * (1.0 / hw)
        d = v - m
        var = jnp.sum(d * d * pix, axis=1, keepdims=True) * (1.0 / (hw - 1))
    return m, d, var


def _vae_norm_kernel(x_ref, pix_ref, cmask_ref,
                     e1_w, e1_b, e2_w, e2_b, bin_w, bin_b,
                     d1_w, d1_b, d2_w, d2_b,
                     o_ref, *, H, W, k, padded):
    HW = H * W
    HWp = x_ref.shape[-1]
    f32 = jnp.float32
    cdt = e1_w.dtype                                   # matmul compute dtype (bf16)

    x = x_ref[...]                                     # (B*C, HWp), f32, lane-dense
    pix = pix_ref[...] if padded else None

    # ---- input instance statistics + normalization (stats reused by AdaIN) ----
    m_in, d_in, var_in = _row_stats(x, pix, HW)
    inv_in = jax.lax.rsqrt(var_in + 1e-5)
    std_in = jnp.sqrt(var_in + 1e-5)                   # kept (f32) for AdaIN
    xn = d_in * inv_in

    # ---- Encoder: 1x1 conv -> SiLU   (BN1 folded forward into e2_w / e2_b) ----
    h = _silu(jnp.dot(e1_w[...], xn.astype(cdt),
                      preferred_element_type=f32) + e1_b[...])

    # flat pixel o = i*W + j; tap (dh,dw) reads position o + dh*W + dw.
    taps = [dh * W + dw for dh in range(k) for dw in range(k)]

    # ---- Encoder: kxk valid conv as k*k MXU-accumulated matmuls over rolled taps ----
    acc = None
    for t, s in enumerate(taps):
        ht = h if s == 0 else pltpu.roll(h, shift=(-s) % HWp, axis=1)
        part = jnp.dot(e2_w[t], ht.astype(cdt), preferred_element_type=f32)
        acc = part if acc is None else acc + part
    a2 = _silu(acc + e2_b[...])                        # (B*Cr, HWp)

    # ---- Binarizer: 1x1 conv (BN2 folded in) -> sign (tanh elided) -> junk mask ----
    u = jnp.dot(bin_w[...], a2.astype(cdt), preferred_element_type=f32) + bin_b[...]
    z = jnp.where(u > 0.0, 1.0, jnp.where(u < 0.0, -1.0, 0.0))
    z = z * cmask_ref[...]                             # zero junk row/col + lane pad

    # ---- Decoder: kxk ConvTranspose (BN folded) -> SiLU, as rolled-tap matmuls ----
    # output o reads z[o - dh*W - dw]; wrapped / out-of-range sources all land on
    # the zeroed junk row/column (or pad) of z, so no extra masking is needed.
    acc = None
    for t, s in enumerate(taps):
        zt = z if s == 0 else pltpu.roll(z, shift=s % HWp, axis=1)
        part = jnp.dot(d1_w[t], zt.astype(cdt), preferred_element_type=f32)
        acc = part if acc is None else acc + part
    y = _silu(acc + d1_b[...])                         # (B*C, HWp)

    # ---- Decoder: 1x1 conv (BN folded) -> SiLU ----
    y2 = _silu(jnp.dot(d2_w[...], y.astype(cdt),
                       preferred_element_type=f32) + d2_b[...])

    # ---- AdaIN: re-apply the input's per-(N,C) mean / std ----
    m_o, d_o, var_o = _row_stats(y2, pix, HW)
    o_ref[...] = d_o * jax.lax.rsqrt(var_o + 1e-5) * std_in + m_in


_PARAM_ORDER = ("e1_w", "e1_b", "e2_w", "e2_b", "bin_w", "bin_b",
                "d1_w", "d1_b", "d2_w", "d2_b")


def init_params(key, dim, k=2, reduction=1):
    """Deterministic synthetic parameters in PyTorch layouts; eval-mode
    BatchNorm running stats already collapsed to per-channel (scale, shift)."""
    cr = dim // reduction
    ks = jax.random.split(key, 13)

    def nrm(k_, shape, s=0.2):
        return s * jax.random.normal(k_, shape, jnp.float32)

    def bn(k_, c):
        k1, k2, k3, k4 = jax.random.split(k_, 4)
        gamma = 1.0 + 0.1 * jax.random.normal(k1, (c,), jnp.float32)
        beta = 0.1 * jax.random.normal(k2, (c,), jnp.float32)
        rm = 0.1 * jax.random.normal(k3, (c,), jnp.float32)
        rv = 1.0 + 0.2 * jax.random.uniform(k4, (c,), jnp.float32)
        scale = gamma / jnp.sqrt(rv + 1e-5)            # BatchNorm2d eps = 1e-5
        shift = beta - rm * scale
        return scale, shift

    bn1_s, bn1_t = bn(ks[9], dim)
    bn2_s, bn2_t = bn(ks[10], cr)
    dbn1_s, dbn1_t = bn(ks[11], dim)
    dbn2_s, dbn2_t = bn(ks[12], dim)

    return dict(
        e1_w=nrm(ks[0], (dim, dim, 1, 1)),             # Conv2d(dim, dim, 1)
        e1_b=nrm(ks[1], (dim,)),
        e2_w=nrm(ks[2], (cr, dim, k, k)),              # Conv2d(dim, cr, k)
        e2_b=nrm(ks[3], (cr,)),
        bin_w=nrm(ks[4], (cr, cr, 1, 1)),              # Binarizer conv, bias=False
        d1_w=nrm(ks[5], (cr, dim, k, k)),              # ConvTranspose2d(cr, dim, k)
        d1_b=nrm(ks[6], (dim,)),
        d2_w=nrm(ks[7], (dim, dim, 1, 1)),             # Conv2d(dim, dim, 1)
        d2_b=nrm(ks[8], (dim,)),
        bn1_s=bn1_s, bn1_t=bn1_t, bn2_s=bn2_s, bn2_t=bn2_t,
        dbn1_s=dbn1_s, dbn1_t=dbn1_t, dbn2_s=dbn2_s, dbn2_t=dbn2_t,
    )


def _fold_and_batch(p, B, k, wdtype):
    """Fold eval-mode BNs into adjacent matmul weights/biases, expand the weights
    to block-diagonal kron(I_B, W) for B samples stacked on sublanes, cast matmul
    weights to `wdtype` (biases stay f32)."""
    e1_w = p["e1_w"][:, :, 0, 0]                                   # (C, C)
    e1_b = p["e1_b"]                                               # (C,)

    # encoder conv2 with its input's BN1 folded into per-tap columns + bias.
    s1, t1 = p["bn1_s"], p["bn1_t"]
    e2_taps = [p["e2_w"][:, :, dh, dw] * s1[None, :]
               for dh in range(k) for dw in range(k)]              # k*k x (Cr, C)
    e2_b = p["e2_b"] + sum(p["e2_w"][:, :, dh, dw] @ t1
                           for dh in range(k) for dw in range(k))  # (Cr,)

    # binarizer conv with its input's BN2 folded in.
    s2, t2 = p["bn2_s"], p["bn2_t"]
    bw = p["bin_w"][:, :, 0, 0]
    bin_w = bw * s2[None, :]
    bin_b = bw @ t2                                                # (Cr,)

    # decoder ConvTranspose with its output BN folded into rows + bias.
    sd1, td1 = p["dbn1_s"], p["dbn1_t"]
    d1_taps = [sd1[:, None] * p["d1_w"][:, :, dh, dw].T
               for dh in range(k) for dw in range(k)]              # k*k x (C, Cr)
    d1_b = sd1 * p["d1_b"] + td1                                   # (C,)

    # decoder 1x1 conv with its output BN folded in.
    sd2, td2 = p["dbn2_s"], p["dbn2_t"]
    d2_w = sd2[:, None] * p["d2_w"][:, :, 0, 0]
    d2_b = sd2 * p["d2_b"] + td2                                   # (C,)

    eye = jnp.eye(B, dtype=jnp.float32)

    def kron(w):
        return jnp.kron(eye, w)

    def kron_taps(ws):
        return jnp.stack([jnp.kron(eye, w) for w in ws])

    def tile_b(v):
        return jnp.tile(v, (B,)).reshape(B * v.shape[0], 1).astype(jnp.float32)

    return dict(
        e1_w=kron(e1_w).astype(wdtype), e1_b=tile_b(e1_b),
        e2_w=kron_taps(e2_taps).astype(wdtype), e2_b=tile_b(e2_b),
        bin_w=kron(bin_w).astype(wdtype), bin_b=tile_b(bin_b),
        d1_w=kron_taps(d1_taps).astype(wdtype), d1_b=tile_b(d1_b),
        d2_w=kron(d2_w).astype(wdtype), d2_b=tile_b(d2_b),
    )


def _pick_batch_block(n, c, hwp):
    """Largest divisor of n whose row count (b*c) fills whole 8-row sublane tiles,
    capped so the block-diagonal weights and the io block stay small."""
    best = None
    for b in range(1, n + 1):
        if n % b:
            continue
        rows = b * c
        if rows > 64 or rows * hwp * 4 > 8 * 2 ** 20:
            break
        if rows % 8 == 0:
            best = b
    # Fallback: whole batch in one step (block == full array is always legal).
    return best if best is not None else n


def vae_norm_forward(x_nchw, params, *, k=2, compute_dtype=jnp.bfloat16):
    """VAENorm eval-mode forward. x_nchw: (N, C, H, W) float32 -> (N, C, H, W)."""
    N, C, H, W = x_nchw.shape
    HW = H * W
    HWp = ((HW + 127) // 128) * 128                    # lane-dense pixel axis
    Cr = params["e2_w"].shape[0]

    B_blk = _pick_batch_block(N, C, HWp)
    grid = (N // B_blk,)
    BC = B_blk * C

    ops = _fold_and_batch(params, B_blk, k, compute_dtype)
    weights = [ops[name] for name in _PARAM_ORDER]

    # Free, layout-preserving reshape (NOT a transpose); zero-pad pixels to HWp.
    x = x_nchw.reshape(N, C, HW).astype(jnp.float32)
    if HWp != HW:
        x = jnp.pad(x, ((0, 0), (0, 0), (0, HWp - HW)))
    x = x.reshape(N * C, HWp)

    # Host-precomputed lane masks (avoid in-kernel integer div/mod):
    #   pix_mask : 1 on real pixels, 0 on lane padding (for masked statistics)
    #   conv_mask: 1 on the (H-k+1)x(W-k+1) valid-conv positions, 0 elsewhere
    cols = jnp.arange(HWp, dtype=jnp.int32)
    in_img = cols < HW
    row, col = cols // W, cols % W
    pix_mask = in_img.astype(jnp.float32).reshape(1, HWp)
    conv_mask = (in_img & (row < H - (k - 1)) & (col < W - (k - 1))
                 ).astype(jnp.float32).reshape(1, HWp)

    def full_spec(a):
        nd = a.ndim
        return pl.BlockSpec(a.shape, lambda b, nd=nd: (0,) * nd)

    # Constant weight specs: Buffered(1) would halve their VMEM (v7x headroom)
    # but is left at the default double-buffering for portability.
    in_specs = [pl.BlockSpec((BC, HWp), lambda b: (b, 0)),         # B_blk samples/step
                full_spec(pix_mask), full_spec(conv_mask)]
    in_specs += [full_spec(w) for w in weights]
    out_spec = pl.BlockSpec((BC, HWp), lambda b: (b, 0))

    # VMEM budget: double-buffered io blocks + live f32/bf16 activation slabs +
    # (double-buffered) weights.
    # TODO(synk): for very large C*H*W (v7x's 64 MiB VMEM) switch to a two-pass
    #             scheme (pass 1: per-(N,C) stats; pass 2: row-block-tiled
    #             normalize->conv->AdaIN with a (k-1)-row halo).
    slab = B_blk * max(C, Cr) * HWp * 4
    io = BC * HWp * 4
    w_bytes = sum(int(w.size) * w.dtype.itemsize for w in weights)
    need = 4 * io + 12 * slab + 2 * w_bytes
    vmem_limit = int(min(40 * 2 ** 20, max(4 * 2 ** 20, 2 * need)))

    kernel = functools.partial(_vae_norm_kernel, H=H, W=W, k=k,
                               padded=(HWp != HW))

    out = pl.pallas_call(
        kernel,
        out_shape=jax.ShapeDtypeStruct((N * C, HWp), jnp.float32),
        grid_spec=pltpu.PrefetchScalarGridSpec(
            num_scalar_prefetch=0,
            grid=grid,
            in_specs=in_specs,
            out_specs=out_spec,
        ),
        compiler_params=pltpu.CompilerParams(
            # batch blocks are independent; on v7x an even grid lets the 2 TCs
            # split them evenly.
            dimension_semantics=("parallel",),
            vmem_limit_bytes=vmem_limit,
        ),
    )(x, pix_mask, conv_mask, *weights)

    out = out.reshape(N, C, HWp)[:, :, :HW]            # drop lane padding
    return out.reshape(N, C, H, W)                     # free reshape back to NCHW


if __name__ == "__main__":
    key = jax.random.PRNGKey(0)
    k_x, k_p = jax.random.split(key)

    N, C, H, W = 2, 4, 16, 16                          # dim=4, k=2, s=1, p=0
    x = jax.random.normal(k_x, (N, C, H, W), jnp.float32)
    params = init_params(k_p, dim=C, k=2, reduction=1)

    out = vae_norm_forward(x, params)
    jax.block_until_ready(out)
    assert out.shape == (N, C, H, W)
    assert bool(jnp.all(jnp.isfinite(out)))
    print("KERNEL_OK")
</pallas_src>

<mosaic_0001>
module attributes {stable_mosaic.version = 11 : i64} {
  func.func @_vae_norm_kernel(%arg0: i32, %arg1: memref<8x256xf32, #tpu.memory_space<vmem>>, %arg2: memref<1x256xf32, #tpu.memory_space<vmem>>, %arg3: memref<1x256xf32, #tpu.memory_space<vmem>>, %arg4: memref<8x8xbf16, #tpu.memory_space<vmem>>, %arg5: memref<8x1xf32, #tpu.memory_space<vmem>>, %arg6: memref<4x8x8xbf16, #tpu.memory_space<vmem>>, %arg7: memref<8x1xf32, #tpu.memory_space<vmem>>, %arg8: memref<8x8xbf16, #tpu.memory_space<vmem>>, %arg9: memref<8x1xf32, #tpu.memory_space<vmem>>, %arg10: memref<4x8x8xbf16, #tpu.memory_space<vmem>>, %arg11: memref<8x1xf32, #tpu.memory_space<vmem>>, %arg12: memref<8x8xbf16, #tpu.memory_space<vmem>>, %arg13: memref<8x1xf32, #tpu.memory_space<vmem>>, %arg14: memref<8x256xf32, #tpu.memory_space<vmem>>) attributes {dimension_semantics = [#tpu.dimension_semantics<parallel>], iteration_bounds = array<i64: 1>, scalar_prefetch = 0 : i64, scratch_operands = 0 : i64, tpu.core_type = #tpu.core_type<tc>, window_params = [{transform_indices = @transform_0, window_bounds = array<i64: 8, 256>}, {pipeline_mode = #tpu.pipeline_mode<synchronous>, transform_indices = @transform_1, window_bounds = array<i64: 1, 256>}, {pipeline_mode = #tpu.pipeline_mode<synchronous>, transform_indices = @transform_2, window_bounds = array<i64: 1, 256>}, {pipeline_mode = #tpu.pipeline_mode<synchronous>, transform_indices = @transform_3, window_bounds = array<i64: 8, 8>}, {pipeline_mode = #tpu.pipeline_mode<synchronous>, transform_indices = @transform_4, window_bounds = array<i64: 8, 1>}, {pipeline_mode = #tpu.pipeline_mode<synchronous>, transform_indices = @transform_5, window_bounds = array<i64: 4, 8, 8>}, {pipeline_mode = #tpu.pipeline_mode<synchronous>, transform_indices = @transform_6, window_bounds = array<i64: 8, 1>}, {pipeline_mode = #tpu.pipeline_mode<synchronous>, transform_indices = @transform_7, window_bounds = array<i64: 8, 8>}, {pipeline_mode = #tpu.pipeline_mode<synchronous>, transform_indices = @transform_8, window_bounds = array<i64: 8, 1>}, {pipeline_mode = #tpu.pipeline_mode<synchronous>, transform_indices = @transform_9, window_bounds = array<i64: 4, 8, 8>}, {pipeline_mode = #tpu.pipeline_mode<synchronous>, transform_indices = @transform_10, window_bounds = array<i64: 8, 1>}, {pipeline_mode = #tpu.pipeline_mode<synchronous>, transform_indices = @transform_11, window_bounds = array<i64: 8, 8>}, {pipeline_mode = #tpu.pipeline_mode<synchronous>, transform_indices = @transform_12, window_bounds = array<i64: 8, 1>}, {transform_indices = @transform_13, window_bounds = array<i64: 8, 256>}]} {
    %c0 = arith.constant 0 : index
    %c0_0 = arith.constant 0 : index
    %0 = vector.load %arg1[%c0, %c0_0] : memref<8x256xf32, #tpu.memory_space<vmem>>, vector<8x256xf32>
    %cst = arith.constant dense<0.000000e+00> : vector<8xf32>
    %1 = vector.multi_reduction <add>, %0, %cst [1] : vector<8x256xf32> to vector<8xf32>
    %2 = vector.shape_cast %1 : vector<8xf32> to vector<8x1xf32>
    %cst_1 = arith.constant 2.560000e+02 : f32
    %3 = vector.broadcast %cst_1 : f32 to vector<8x1xf32>
    %4 = arith.divf %2, %3 : vector<8x1xf32>
    %5 = vector.broadcast %4 : vector<8x1xf32> to vector<8x256xf32>
    %6 = arith.subf %0, %5 : vector<8x256xf32>
    %7 = arith.mulf %6, %6 : vector<8x256xf32>
    %cst_2 = arith.constant dense<0.000000e+00> : vector<8xf32>
    %8 = vector.multi_reduction <add>, %7, %cst_2 [1] : vector<8x256xf32> to vector<8xf32>
    %9 = vector.shape_cast %8 : vector<8xf32> to vector<8x1xf32>
    %cst_3 = arith.constant 0.00392156886 : f32
    %10 = vector.broadcast %cst_3 : f32 to vector<8x1xf32>
    %11 = arith.mulf %9, %10 : vector<8x1xf32>
    %cst_4 = arith.constant 9.99999974E-6 : f32
    %12 = vector.broadcast %cst_4 : f32 to vector<8x1xf32>
    %13 = arith.addf %11, %12 : vector<8x1xf32>
    %14 = math.rsqrt %13 : vector<8x1xf32>
    %cst_5 = arith.constant 9.99999974E-6 : f32
    %15 = vector.broadcast %cst_5 : f32 to vector<8x1xf32>
    %16 = arith.addf %11, %15 : vector<8x1xf32>
    %17 = math.sqrt %16 : vector<8x1xf32>
    %18 = vector.broadcast %14 : vector<8x1xf32> to vector<8x256xf32>
    %19 = arith.mulf %6, %18 : vector<8x256xf32>
    %c0_6 = arith.constant 0 : index
    %c0_7 = arith.constant 0 : index
    %20 = vector.load %arg4[%c0_6, %c0_7] : memref<8x8xbf16, #tpu.memory_space<vmem>>, vector<8x8xbf16>
    %21 = arith.truncf %19 : vector<8x256xf32> to vector<8x256xbf16>
    %cst_8 = arith.constant dense<0.000000e+00> : vector<8x256xf32>
    %22 = tpu.matmul %20, %21, %cst_8 {dimension_numbers = #tpu.dot_dimension_numbers<[1], [0], [0], [1], [0, 0, 1, 1], [], []>} : vector<8x8xbf16>, vector<8x256xbf16>, vector<8x256xf32> -> vector<8x256xf32>
    %c0_9 = arith.constant 0 : index
    %c0_10 = arith.constant 0 : index
    %23 = vector.load %arg5[%c0_9, %c0_10] : memref<8x1xf32, #tpu.memory_space<vmem>>, vector<8x1xf32>
    %24 = vector.broadcast %23 : vector<8x1xf32> to vector<8x256xf32>
    %25 = arith.addf %22, %24 : vector<8x256xf32>
    %cst_11 = arith.constant 0.000000e+00 : f32
    %26 = vector.broadcast %cst_11 : f32 to vector<8x256xf32>
    %27 = arith.subf %26, %25 : vector<8x256xf32>
    %28 = math.exp %27 : vector<8x256xf32>
    %cst_12 = arith.constant 1.000000e+00 : f32
    %29 = vector.broadcast %cst_12 : f32 to vector<8x256xf32>
    %30 = arith.addf %29, %28 : vector<8x256xf32>
    %31 = arith.divf %25, %30 : vector<8x256xf32>
    %c0_13 = arith.constant 0 : index
    %c0_14 = arith.constant 0 : index
    %c0_15 = arith.constant 0 : index
    %32 = vector.load %arg6[%c0_13, %c0_14, %c0_15] : memref<4x8x8xbf16, #tpu.memory_space<vmem>>, vector<1x8x8xbf16>
    %33 = vector.shape_cast %32 : vector<1x8x8xbf16> to vector<8x8xbf16>
    %34 = arith.truncf %31 : vector<8x256xf32> to vector<8x256xbf16>
    %cst_16 = arith.constant dense<0.000000e+00> : vector<8x256xf32>
    %35 = tpu.matmul %33, %34, %cst_16 {dimension_numbers = #tpu.dot_dimension_numbers<[1], [0], [0], [1], [0, 0, 1, 1], [], []>} : vector<8x8xbf16>, vector<8x256xbf16>, vector<8x256xf32> -> vector<8x256xf32>
    %c255_i32 = arith.constant 255 : i32
    %36 = tpu.dynamic_rotate %31 by %c255_i32 dim 1 : vector<8x256xf32>, i32 -> vector<8x256xf32>
    %c1 = arith.constant 1 : index
    %c0_17 = arith.constant 0 : index
    %c0_18 = arith.constant 0 : index
    %37 = vector.load %arg6[%c1, %c0_17, %c0_18] : memref<4x8x8xbf16, #tpu.memory_space<vmem>>, vector<1x8x8xbf16>
    %38 = vector.shape_cast %37 : vector<1x8x8xbf16> to vector<8x8xbf16>
    %39 = arith.truncf %36 : vector<8x256xf32> to vector<8x256xbf16>
    %cst_19 = arith.constant dense<0.000000e+00> : vector<8x256xf32>
    %40 = tpu.matmul %38, %39, %cst_19 {dimension_numbers = #tpu.dot_dimension_numbers<[1], [0], [0], [1], [0, 0, 1, 1], [], []>} : vector<8x8xbf16>, vector<8x256xbf16>, vector<8x256xf32> -> vector<8x256xf32>
    %41 = arith.addf %35, %40 : vector<8x256xf32>
    %c240_i32 = arith.constant 240 : i32
    %42 = tpu.dynamic_rotate %31 by %c240_i32 dim 1 : vector<8x256xf32>, i32 -> vector<8x256xf32>
    %c2 = arith.constant 2 : index
    %c0_20 = arith.constant 0 : index
    %c0_21 = arith.constant 0 : index
    %43 = vector.load %arg6[%c2, %c0_20, %c0_21] : memref<4x8x8xbf16, #tpu.memory_space<vmem>>, vector<1x8x8xbf16>
    %44 = vector.shape_cast %43 : vector<1x8x8xbf16> to vector<8x8xbf16>
    %45 = arith.truncf %42 : vector<8x256xf32> to vector<8x256xbf16>
    %cst_22 = arith.constant dense<0.000000e+00> : vector<8x256xf32>
    %46 = tpu.matmul %44, %45, %cst_22 {dimension_numbers = #tpu.dot_dimension_numbers<[1], [0], [0], [1], [0, 0, 1, 1], [], []>} : vector<8x8xbf16>, vector<8x256xbf16>, vector<8x256xf32> -> vector<8x256xf32>
    %47 = arith.addf %41, %46 : vector<8x256xf32>
    %c239_i32 = arith.constant 239 : i32
    %48 = tpu.dynamic_rotate %31 by %c239_i32 dim 1 : vector<8x256xf32>, i32 -> vector<8x256xf32>
    %c3 = arith.constant 3 : index
    %c0_23 = arith.constant 0 : index
    %c0_24 = arith.constant 0 : index
    %49 = vector.load %arg6[%c3, %c0_23, %c0_24] : memref<4x8x8xbf16, #tpu.memory_space<vmem>>, vector<1x8x8xbf16>
    %50 = vector.shape_cast %49 : vector<1x8x8xbf16> to vector<8x8xbf16>
    %51 = arith.truncf %48 : vector<8x256xf32> to vector<8x256xbf16>
    %cst_25 = arith.constant dense<0.000000e+00> : vector<8x256xf32>
    %52 = tpu.matmul %50, %51, %cst_25 {dimension_numbers = #tpu.dot_dimension_numbers<[1], [0], [0], [1], [0, 0, 1, 1], [], []>} : vector<8x8xbf16>, vector<8x256xbf16>, vector<8x256xf32> -> vector<8x256xf32>
    %53 = arith.addf %47, %52 : vector<8x256xf32>
    %c0_26 = arith.constant 0 : index
    %c0_27 = arith.constant 0 : index
    %54 = vector.load %arg7[%c0_26, %c0_27] : memref<8x1xf32, #tpu.memory_space<vmem>>, vector<8x1xf32>
    %55 = vector.broadcast %54 : vector<8x1xf32> to vector<8x256xf32>
    %56 = arith.addf %53, %55 : vector<8x256xf32>
    %cst_28 = arith.constant 0.000000e+00 : f32
    %57 = vector.broadcast %cst_28 : f32 to vector<8x256xf32>
    %58 = arith.subf %57, %56 : vector<8x256xf32>
    %59 = math.exp %58 : vector<8x256xf32>
    %cst_29 = arith.constant 1.000000e+00 : f32
    %60 = vector.broadcast %cst_29 : f32 to vector<8x256xf32>
    %61 = arith.addf %60, %59 : vector<8x256xf32>
    %62 = arith.divf %56, %61 : vector<8x256xf32>
    %c0_30 = arith.constant 0 : index
    %c0_31 = arith.constant 0 : index
    %63 = vector.load %arg8[%c0_30, %c0_31] : memref<8x8xbf16, #tpu.memory_space<vmem>>, vector<8x8xbf16>
    %64 = arith.truncf %62 : vector<8x256xf32> to vector<8x256xbf16>
    %cst_32 = arith.constant dense<0.000000e+00> : vector<8x256xf32>
    %65 = tpu.matmul %63, %64, %cst_32 {dimension_numbers = #tpu.dot_dimension_numbers<[1], [0], [0], [1], [0, 0, 1, 1], [], []>} : vector<8x8xbf16>, vector<8x256xbf16>, vector<8x256xf32> -> vector<8x256xf32>
    %c0_33 = arith.constant 0 : index
    %c0_34 = arith.constant 0 : index
    %66 = vector.load %arg9[%c0_33, %c0_34] : memref<8x1xf32, #tpu.memory_space<vmem>>, vector<8x1xf32>
    %67 = vector.broadcast %66 : vector<8x1xf32> to vector<8x256xf32>
    %68 = arith.addf %65, %67 : vector<8x256xf32>
    %cst_35 = arith.constant 0.000000e+00 : f32
    %69 = vector.broadcast %cst_35 : f32 to vector<8x256xf32>
    %70 = arith.cmpf ogt, %68, %69 : vector<8x256xf32>
    %cst_36 = arith.constant 0.000000e+00 : f32
    %71 = vector.broadcast %cst_36 : f32 to vector<8x256xf32>
    %72 = arith.cmpf olt, %68, %71 : vector<8x256xf32>
    %cst_37 = arith.constant -1.000000e+00 : f32
    %cst_38 = arith.constant 0.000000e+00 : f32
    %73 = vector.broadcast %cst_37 : f32 to vector<8x256xf32>
    %74 = vector.broadcast %cst_38 : f32 to vector<8x256xf32>
    %75 = arith.select %72, %73, %74 : vector<8x256xi1>, vector<8x256xf32>
    %cst_39 = arith.constant 1.000000e+00 : f32
    %76 = vector.broadcast %cst_39 : f32 to vector<8x256xf32>
    %77 = arith.select %70, %76, %75 : vector<8x256xi1>, vector<8x256xf32>
    %c0_40 = arith.constant 0 : index
    %c0_41 = arith.constant 0 : index
    %78 = vector.load %arg3[%c0_40, %c0_41] : memref<1x256xf32, #tpu.memory_space<vmem>>, vector<1x256xf32>
    %79 = vector.broadcast %78 : vector<1x256xf32> to vector<8x256xf32>
    %80 = arith.mulf %77, %79 : vector<8x256xf32>
    %c0_42 = arith.constant 0 : index
    %c0_43 = arith.constant 0 : index
    %c0_44 = arith.constant 0 : index
    %81 = vector.load %arg10[%c0_42, %c0_43, %c0_44] : memref<4x8x8xbf16, #tpu.memory_space<vmem>>, vector<1x8x8xbf16>
    %82 = vector.shape_cast %81 : vector<1x8x8xbf16> to vector<8x8xbf16>
    %83 = arith.truncf %80 : vector<8x256xf32> to vector<8x256xbf16>
    %cst_45 = arith.constant dense<0.000000e+00> : vector<8x256xf32>
    %84 = tpu.matmul %82, %83, %cst_45 {dimension_numbers = #tpu.dot_dimension_numbers<[1], [0], [0], [1], [0, 0, 1, 1], [], []>} : vector<8x8xbf16>, vector<8x256xbf16>, vector<8x256xf32> -> vector<8x256xf32>
    %c1_i32 = arith.constant 1 : i32
    %85 = tpu.dynamic_rotate %80 by %c1_i32 dim 1 : vector<8x256xf32>, i32 -> vector<8x256xf32>
    %c1_46 = arith.constant 1 : index
    %c0_47 = arith.constant 0 : index
    %c0_48 = arith.constant 0 : index
    %86 = vector.load %arg10[%c1_46, %c0_47, %c0_48] : memref<4x8x8xbf16, #tpu.memory_space<vmem>>, vector<1x8x8xbf16>
    %87 = vector.shape_cast %86 : vector<1x8x8xbf16> to vector<8x8xbf16>
    %88 = arith.truncf %85 : vector<8x256xf32> to vector<8x256xbf16>
    %cst_49 = arith.constant dense<0.000000e+00> : vector<8x256xf32>
    %89 = tpu.matmul %87, %88, %cst_49 {dimension_numbers = #tpu.dot_dimension_numbers<[1], [0], [0], [1], [0, 0, 1, 1], [], []>} : vector<8x8xbf16>, vector<8x256xbf16>, vector<8x256xf32> -> vector<8x256xf32>
    %90 = arith.addf %84, %89 : vector<8x256xf32>
    %c16_i32 = arith.constant 16 : i32
    %91 = tpu.dynamic_rotate %80 by %c16_i32 dim 1 : vector<8x256xf32>, i32 -> vector<8x256xf32>
    %c2_50 = arith.constant 2 : index
    %c0_51 = arith.constant 0 : index
    %c0_52 = arith.constant 0 : index
    %92 = vector.load %arg10[%c2_50, %c0_51, %c0_52] : memref<4x8x8xbf16, #tpu.memory_space<vmem>>, vector<1x8x8xbf16>
    %93 = vector.shape_cast %92 : vector<1x8x8xbf16> to vector<8x8xbf16>
    %94 = arith.truncf %91 : vector<8x256xf32> to vector<8x256xbf16>
    %cst_53 = arith.constant dense<0.000000e+00> : vector<8x256xf32>
    %95 = tpu.matmul %93, %94, %cst_53 {dimension_numbers = #tpu.dot_dimension_numbers<[1], [0], [0], [1], [0, 0, 1, 1], [], []>} : vector<8x8xbf16>, vector<8x256xbf16>, vector<8x256xf32> -> vector<8x256xf32>
    %96 = arith.addf %90, %95 : vector<8x256xf32>
    %c17_i32 = arith.constant 17 : i32
    %97 = tpu.dynamic_rotate %80 by %c17_i32 dim 1 : vector<8x256xf32>, i32 -> vector<8x256xf32>
    %c3_54 = arith.constant 3 : index
    %c0_55 = arith.constant 0 : index
    %c0_56 = arith.constant 0 : index
    %98 = vector.load %arg10[%c3_54, %c0_55, %c0_56] : memref<4x8x8xbf16, #tpu.memory_space<vmem>>, vector<1x8x8xbf16>
    %99 = vector.shape_cast %98 : vector<1x8x8xbf16> to vector<8x8xbf16>
    %100 = arith.truncf %97 : vector<8x256xf32> to vector<8x256xbf16>
    %cst_57 = arith.constant dense<0.000000e+00> : vector<8x256xf32>
    %101 = tpu.matmul %99, %100, %cst_57 {dimension_numbers = #tpu.dot_dimension_numbers<[1], [0], [0], [1], [0, 0, 1, 1], [], []>} : vector<8x8xbf16>, vector<8x256xbf16>, vector<8x256xf32> -> vector<8x256xf32>
    %102 = arith.addf %96, %101 : vector<8x256xf32>
    %c0_58 = arith.constant 0 : index
    %c0_59 = arith.constant 0 : index
    %103 = vector.load %arg11[%c0_58, %c0_59] : memref<8x1xf32, #tpu.memory_space<vmem>>, vector<8x1xf32>
    %104 = vector.broadcast %103 : vector<8x1xf32> to vector<8x256xf32>
    %105 = arith.addf %102, %104 : vector<8x256xf32>
    %cst_60 = arith.constant 0.000000e+00 : f32
    %106 = vector.broadcast %cst_60 : f32 to vector<8x256xf32>
    %107 = arith.subf %106, %105 : vector<8x256xf32>
    %108 = math.exp %107 : vector<8x256xf32>
    %cst_61 = arith.constant 1.000000e+00 : f32
    %109 = vector.broadcast %cst_61 : f32 to vector<8x256xf32>
    %110 = arith.addf %109, %108 : vector<8x256xf32>
    %111 = arith.divf %105, %110 : vector<8x256xf32>
    %c0_62 = arith.constant 0 : index
    %c0_63 = arith.constant 0 : index
    %112 = vector.load %arg12[%c0_62, %c0_63] : memref<8x8xbf16, #tpu.memory_space<vmem>>, vector<8x8xbf16>
    %113 = arith.truncf %111 : vector<8x256xf32> to vector<8x256xbf16>
    %cst_64 = arith.constant dense<0.000000e+00> : vector<8x256xf32>
    %114 = tpu.matmul %112, %113, %cst_64 {dimension_numbers = #tpu.dot_dimension_numbers<[1], [0], [0], [1], [0, 0, 1, 1], [], []>} : vector<8x8xbf16>, vector<8x256xbf16>, vector<8x256xf32> -> vector<8x256xf32>
    %c0_65 = arith.constant 0 : index
    %c0_66 = arith.constant 0 : index
    %115 = vector.load %arg13[%c0_65, %c0_66] : memref<8x1xf32, #tpu.memory_space<vmem>>, vector<8x1xf32>
    %116 = vector.broadcast %115 : vector<8x1xf32> to vector<8x256xf32>
    %117 = arith.addf %114, %116 : vector<8x256xf32>
    %cst_67 = arith.constant 0.000000e+00 : f32
    %118 = vector.broadcast %cst_67 : f32 to vector<8x256xf32>
    %119 = arith.subf %118, %117 : vector<8x256xf32>
    %120 = math.exp %119 : vector<8x256xf32>
    %cst_68 = arith.constant 1.000000e+00 : f32
    %121 = vector.broadcast %cst_68 : f32 to vector<8x256xf32>
    %122 = arith.addf %121, %120 : vector<8x256xf32>
    %123 = arith.divf %117, %122 : vector<8x256xf32>
    %cst_69 = arith.constant dense<0.000000e+00> : vector<8xf32>
    %124 = vector.multi_reduction <add>, %123, %cst_69 [1] : vector<8x256xf32> to vector<8xf32>
    %125 = vector.shape_cast %124 : vector<8xf32> to vector<8x1xf32>
    %cst_70 = arith.constant 2.560000e+02 : f32
    %126 = vector.broadcast %cst_70 : f32 to vector<8x1xf32>
    %127 = arith.divf %125, %126 : vector<8x1xf32>
    %128 = vector.broadcast %127 : vector<8x1xf32> to vector<8x256xf32>
    %129 = arith.subf %123, %128 : vector<8x256xf32>
    %130 = arith.mulf %129, %129 : vector<8x256xf32>
    %cst_71 = arith.constant dense<0.000000e+00> : vector<8xf32>
    %131 = vector.multi_reduction <add>, %130, %cst_71 [1] : vector<8x256xf32> to vector<8xf32>
    %132 = vector.shape_cast %131 : vector<8xf32> to vector<8x1xf32>
    %cst_72 = arith.constant 0.00392156886 : f32
    %133 = vector.broadcast %cst_72 : f32 to vector<8x1xf32>
    %134 = arith.mulf %132, %133 : vector<8x1xf32>
    %cst_73 = arith.constant 9.99999974E-6 : f32
    %135 = vector.broadcast %cst_73 : f32 to vector<8x1xf32>
    %136 = arith.addf %134, %135 : vector<8x1xf32>
    %137 = math.rsqrt %136 : vector<8x1xf32>
    %138 = vector.broadcast %137 : vector<8x1xf32> to vector<8x256xf32>
    %139 = arith.mulf %129, %138 : vector<8x256xf32>
    %140 = vector.broadcast %17 : vector<8x1xf32> to vector<8x256xf32>
    %141 = arith.mulf %139, %140 : vector<8x256xf32>
    %142 = vector.broadcast %4 : vector<8x1xf32> to vector<8x256xf32>
    %143 = arith.addf %141, %142 : vector<8x256xf32>
    %c0_74 = arith.constant 0 : index
    %c0_75 = arith.constant 0 : index
    %144 = vector.load %arg14[%c0_74, %c0_75] : memref<8x256xf32, #tpu.memory_space<vmem>>, vector<8x256xf32>
    tpu.vector_store %arg14[%c0_74, %c0_75], %143 {strides = array<i32>} : memref<8x256xf32, #tpu.memory_space<vmem>>, vector<8x256xf32>,
    return
  }
  func.func @transform_0(%arg0: i32) -> (i32, i32) {
    %c0_i32 = arith.constant 0 : i32
    %c0_i32_0 = arith.constant 0 : i32
    return %arg0, %c0_i32 : i32, i32
  }
  func.func @transform_1(%arg0: i32) -> (i32, i32) {
    %c0_i32 = arith.constant 0 : i32
    %c0_i32_0 = arith.constant 0 : i32
    %c0_i32_1 = arith.constant 0 : i32
    return %c0_i32, %c0_i32_0 : i32, i32
  }
  func.func @transform_2(%arg0: i32) -> (i32, i32) {
    %c0_i32 = arith.constant 0 : i32
    %c0_i32_0 = arith.constant 0 : i32
    %c0_i32_1 = arith.constant 0 : i32
    return %c0_i32, %c0_i32_0 : i32, i32
  }
  func.func @transform_3(%arg0: i32) -> (i32, i32) {
    %c0_i32 = arith.constant 0 : i32
    %c0_i32_0 = arith.constant 0 : i32
    %c0_i32_1 = arith.constant 0 : i32
    return %c0_i32, %c0_i32_0 : i32, i32
  }
  func.func @transform_4(%arg0: i32) -> (i32, i32) {
    %c0_i32 = arith.constant 0 : i32
    %c0_i32_0 = arith.constant 0 : i32
    %c0_i32_1 = arith.constant 0 : i32
    return %c0_i32, %c0_i32_0 : i32, i32
  }
  func.func @transform_5(%arg0: i32) -> (i32, i32, i32) {
    %c0_i32 = arith.constant 0 : i32
    %c0_i32_0 = arith.constant 0 : i32
    %c0_i32_1 = arith.constant 0 : i32
    %c0_i32_2 = arith.constant 0 : i32
    return %c0_i32, %c0_i32_0, %c0_i32_1 : i32, i32, i32
  }
  func.func @transform_6(%arg0: i32) -> (i32, i32) {
    %c0_i32 = arith.constant 0 : i32
    %c0_i32_0 = arith.constant 0 : i32
    %c0_i32_1 = arith.constant 0 : i32
    return %c0_i32, %c0_i32_0 : i32, i32
  }
  func.func @transform_7(%arg0: i32) -> (i32, i32) {
    %c0_i32 = arith.constant 0 : i32
    %c0_i32_0 = arith.constant 0 : i32
    %c0_i32_1 = arith.constant 0 : i32
    return %c0_i32, %c0_i32_0 : i32, i32
  }
  func.func @transform_8(%arg0: i32) -> (i32, i32) {
    %c0_i32 = arith.constant 0 : i32
    %c0_i32_0 = arith.constant 0 : i32
    %c0_i32_1 = arith.constant 0 : i32
    return %c0_i32, %c0_i32_0 : i32, i32
  }
  func.func @transform_9(%arg0: i32) -> (i32, i32, i32) {
    %c0_i32 = arith.constant 0 : i32
    %c0_i32_0 = arith.constant 0 : i32
    %c0_i32_1 = arith.constant 0 : i32
    %c0_i32_2 = arith.constant 0 : i32
    return %c0_i32, %c0_i32_0, %c0_i32_1 : i32, i32, i32
  }
  func.func @transform_10(%arg0: i32) -> (i32, i32) {
    %c0_i32 = arith.constant 0 : i32
    %c0_i32_0 = arith.constant 0 : i32
    %c0_i32_1 = arith.constant 0 : i32
    return %c0_i32, %c0_i32_0 : i32, i32
  }
  func.func @transform_11(%arg0: i32) -> (i32, i32) {
    %c0_i32 = arith.constant 0 : i32
    %c0_i32_0 = arith.constant 0 : i32
    %c0_i32_1 = arith.constant 0 : i32
    return %c0_i32, %c0_i32_0 : i32, i32
  }
  func.func @transform_12(%arg0: i32) -> (i32, i32) {
    %c0_i32 = arith.constant 0 : i32
    %c0_i32_0 = arith.constant 0 : i32
    %c0_i32_1 = arith.constant 0 : i32
    return %c0_i32, %c0_i32_0 : i32, i32
  }
  func.func @transform_13(%arg0: i32) -> (i32, i32) {
    %c0_i32 = arith.constant 0 : i32
    %c0_i32_0 = arith.constant 0 : i32
    return %arg0, %c0_i32 : i32, i32
  }
}

</mosaic_0001>

<llo_original>
// kernel: tpu_custom_call.1
$region0: #{tpu_custom_call.1}
  #allocation0 [shape = 'u32[]', space=smem, size = 0x4, offset = 0x4, fixed_abs, tag = 'smem constant byte address 0x4 - core index']
  #allocation1 [shape = 'u32[72,128]{1,0:T(1,128)}', space=vmem, size = 0x9000, scoped, tag = 'internal scratch']
  %s0 = inlined_call_operand.vmem [shape: f32[8,256], index: 0, kind: input, shape index: {}]
  %s1 = inlined_call_operand.hbm [shape: f32[1,256], index: 1, kind: input, shape index: {}]
  %s2 = inlined_call_operand.hbm [shape: f32[1,256], index: 2, kind: input, shape index: {}]
  %s3 = inlined_call_operand.vmem [shape: bf16[8,8], index: 3, kind: input, shape index: {}]
  %s4 = inlined_call_operand.vmem [shape: f32[8,1], index: 4, kind: input, shape index: {}]
  %s5 = inlined_call_operand.vmem [shape: bf16[4,8,8], index: 5, kind: input, shape index: {}]
  %s6 = inlined_call_operand.vmem [shape: f32[8,1], index: 6, kind: input, shape index: {}]
  %s7 = inlined_call_operand.vmem [shape: bf16[8,8], index: 7, kind: input, shape index: {}]
  %s8 = inlined_call_operand.vmem [shape: f32[8,1], index: 8, kind: input, shape index: {}]
  %s9 = inlined_call_operand.hbm [shape: bf16[4,8,8], index: 9, kind: input, shape index: {}]
  %s10 = inlined_call_operand.vmem [shape: f32[8,1], index: 10, kind: input, shape index: {}]
  %s11 = inlined_call_operand.vmem [shape: bf16[8,8], index: 11, kind: input, shape index: {}]
  %s12 = inlined_call_operand.vmem [shape: f32[8,1], index: 12, kind: input, shape index: {}]
  %s13 = inlined_call_operand.hbm [shape: f32[8,256], index: 13, kind: output, shape index: {}]
  %s14 = sld [smem:[#allocation0]]
  $region74: #{tpu_custom_call.1} parent=0
    _
  %s16 = ssub.s32 1, %s14
  %s17 = scalar_select 0, %s16, %s14
  $region1: #{tpu_custom_call.1} parent=0
    #allocation2 [shape = 'u8[1024]{0}', space=vmem, size = 0x400, scoped, tag = 'input window, operand 1, single buffered']
    #allocation3 [shape = 's32[1]{0}', space=sflag, size = 0x4, scoped, tag = 'scoped memory for tpu_custom_call.1']
    #allocation4 [shape = 's32[1]{0}', space=sflag, size = 0x4, scoped, tag = 'scoped memory for tpu_custom_call.1']
    #allocation5 [shape = 'u8[1024]{0}', space=vmem, size = 0x400, scoped, tag = 'input window, operand 2, single buffered']
    #allocation6 [shape = 's32[1]{0}', space=sflag, size = 0x4, scoped, tag = 'scoped memory for tpu_custom_call.1']
    #allocation7 [shape = 'u8[8192]{0}', space=vmem, size = 0x2000, scoped, tag = 'input window, operand 9, single buffered']
    #allocation8 [shape = 'u8[8192]{0}', space=vmem, size = 0x2000, scoped, tag = 'output window, operand 0, single buffered']
    %18 = vsyncpa [#allocation3], 0
    %19 = vsyncpa [#allocation6], 0
    %20 = vsyncpa [#allocation4], 0
    // Predicated region
    $region2: #{tpu_custom_call.1} parent=1 // pred_check
      _
    $region3: #{tpu_custom_call.1} parent=1 // pred_check_branch
      %22 = sbr.rel (0) target = $region5
    $region4: #{tpu_custom_call.1} parent=1 // pred_region
      _
    $region5: #{tpu_custom_call.1} parent=1 // pred_fallthru
      _
    // Predicated region
    $region6: #{tpu_custom_call.1} parent=1 // pred_check
      _
    $region7: #{tpu_custom_call.1} parent=1 // pred_check_branch
      %24 = sbr.rel (0) target = $region9
    $region8: #{tpu_custom_call.1} parent=1 // pred_region
      %26 = vsyncadd [#allocation3], 0
      %s28 = sshll.u32 %s1, 4
      %s29 = int_to_ptr.hbm [resolvable:$true] %s28
      %s30 = sshll.u32 [#allocation2], 4
      %s31 = int_to_ptr.vmem [resolvable:$true] %s30
      %33 = dma.hbm_to_vmem [thread:$0]  %s29, 32, %s31, [#allocation3]
    $region9: #{tpu_custom_call.1} parent=1 // pred_fallthru
      _
    // Predicated region
    $region10: #{tpu_custom_call.1} parent=1 // pred_check
      _
    $region11: #{tpu_custom_call.1} parent=1 // pred_check_branch
      %35 = sbr.rel (0) target = $region13
    $region12: #{tpu_custom_call.1} parent=1 // pred_region
      %37 = vsyncadd [#allocation6], 0
      %s39 = sshll.u32 %s2, 4
      %s40 = int_to_ptr.hbm [resolvable:$true] %s39
      %s41 = sshll.u32 [#allocation5], 4
      %s42 = int_to_ptr.vmem [resolvable:$true] %s41
      %44 = dma.hbm_to_vmem [thread:$0]  %s40, 32, %s42, [#allocation6]
    $region13: #{tpu_custom_call.1} parent=1 // pred_fallthru
      _
    // Predicated region
    $region14: #{tpu_custom_call.1} parent=1 // pred_check
      _
    $region15: #{tpu_custom_call.1} parent=1 // pred_check_branch
      %46 = sbr.rel (0) target = $region17
    $region16: #{tpu_custom_call.1} parent=1 // pred_region
      _
    $region17: #{tpu_custom_call.1} parent=1 // pred_fallthru
      _
    // Predicated region
    $region18: #{tpu_custom_call.1} parent=1 // pred_check
      _
    $region19: #{tpu_custom_call.1} parent=1 // pred_check_branch
      %48 = sbr.rel (0) target = $region21
    $region20: #{tpu_custom_call.1} parent=1 // pred_region
      _
    $region21: #{tpu_custom_call.1} parent=1 // pred_fallthru
      _
    // Predicated region
    $region22: #{tpu_custom_call.1} parent=1 // pred_check
      _
    $region23: #{tpu_custom_call.1} parent=1 // pred_check_branch
      %50 = sbr.rel (0) target = $region25
    $region24: #{tpu_custom_call.1} parent=1 // pred_region
      _
    $region25: #{tpu_custom_call.1} parent=1 // pred_fallthru
      _
    // Predicated region
    $region26: #{tpu_custom_call.1} parent=1 // pred_check
      _
    $region27: #{tpu_custom_call.1} parent=1 // pred_check_branch
      %52 = sbr.rel (0) target = $region29
    $region28: #{tpu_custom_call.1} parent=1 // pred_region
      _
    $region29: #{tpu_custom_call.1} parent=1 // pred_fallthru
      _
    // Predicated region
    $region30: #{tpu_custom_call.1} parent=1 // pred_check
      _
    $region31: #{tpu_custom_call.1} parent=1 // pred_check_branch
      %54 = sbr.rel (0) target = $region33
    $region32: #{tpu_custom_call.1} parent=1 // pred_region
      _
    $region33: #{tpu_custom_call.1} parent=1 // pred_fallthru
      _
    // Predicated region
    $region34: #{tpu_custom_call.1} parent=1 // pred_check
      _
    $region35: #{tpu_custom_call.1} parent=1 // pred_check_branch
      %56 = sbr.rel (0) target = $region37
    $region36: #{tpu_custom_call.1} parent=1 // pred_region
      _
    $region37: #{tpu_custom_call.1} parent=1 // pred_fallthru
      _
    // Predicated region
    $region38: #{tpu_custom_call.1} parent=1 // pred_check
      _
    $region39: #{tpu_custom_call.1} parent=1 // pred_check_branch
      %58 = sbr.rel (0) target = $region41
    $region40: #{tpu_custom_call.1} parent=1 // pred_region
      %60 = vsyncadd [#allocation6], 0
      %s61 = sshll.u32 %s9, 4
      %s62 = int_to_ptr.hbm [resolvable:$true] %s61
      %s63 = sshll.u32 [#allocation7], 4
      %s64 = int_to_ptr.vmem [resolvable:$true] %s63
      %69 = dma.hbm_to_vmem [thread:$0]  %s62, 256, %s64, [#allocation6], 64, 64, 4
    $region41: #{tpu_custom_call.1} parent=1 // pred_fallthru
      _
    // Predicated region
    $region42: #{tpu_custom_call.1} parent=1 // pred_check
      _
    $region43: #{tpu_custom_call.1} parent=1 // pred_check_branch
      %71 = sbr.rel (0) target = $region45
    $region44: #{tpu_custom_call.1} parent=1 // pred_region
      _
    $region45: #{tpu_custom_call.1} parent=1 // pred_fallthru
      _
    // Predicated region
    $region46: #{tpu_custom_call.1} parent=1 // pred_check
      _
    $region47: #{tpu_custom_call.1} parent=1 // pred_check_branch
      %73 = sbr.rel (0) target = $region49
    $region48: #{tpu_custom_call.1} parent=1 // pred_region
      _
    $region49: #{tpu_custom_call.1} parent=1 // pred_fallthru
      _
    // Predicated region
    $region50: #{tpu_custom_call.1} parent=1 // pred_check
      _
    $region51: #{tpu_custom_call.1} parent=1 // pred_check_branch
      %75 = sbr.rel (0) target = $region53
    $region52: #{tpu_custom_call.1} parent=1 // pred_region
      _
    $region53: #{tpu_custom_call.1} parent=1 // pred_fallthru
      _
    // Predicated region
    $region54: #{tpu_custom_call.1} parent=1 // pred_check
      _
    $region55: #{tpu_custom_call.1} parent=1 // pred_check_branch
      %77 = sbr.rel (0) target = $region57
    $region56: #{tpu_custom_call.1} parent=1 // pred_region
      %79 = dma.done [#allocation3], 32
    $region57: #{tpu_custom_call.1} parent=1 // pred_fallthru
      _
    // Predicated region
    $region58: #{tpu_custom_call.1} parent=1 // pred_check
      _
    $region59: #{tpu_custom_call.1} parent=1 // pred_check_branch
      %81 = sbr.rel (0) target = $region61
    $region60: #{tpu_custom_call.1} parent=1 // pred_region
      %83 = dma.done [#allocation6], 32
    $region61: #{tpu_custom_call.1} parent=1 // pred_fallthru
      _
    // Predicated region
    $region62: #{tpu_custom_call.1} parent=1 // pred_check
      _
    $region63: #{tpu_custom_call.1} parent=1 // pred_check_branch
      %85 = sbr.rel (0) target = $region65
    $region64: #{tpu_custom_call.1} parent=1 // pred_region
      %87 = dma.done [#allocation6], 256
    $region65: #{tpu_custom_call.1} parent=1 // pred_fallthru
      _
    %v89 = vld [vmem:[%s0] sm:$0xff]
    %v90 = vld [vmem:[%s0 + $0x8] sm:$0xff]
    %v91 = vadd.f32 %v89, %v90
    %92 = vadd.xlane.f32.xlu0 %v91
    %v93 = vpop.xlane.xlu0 %92
    %v94 = vrcp.pop 256.0
    %v95 = vmul.f32 256.0, %v94
    %v96 = vsub.f32 1.0, %v95
    %v97 = vmul.f32 %v94, %v96
    %v98 = vadd.f32 %v94, %v97
    %vm99 = vweird.f32 %v94
    %v100 = vsel %vm99, %v94, %v98
    %v101 = vmul.f32 %v93, %v100
    %v102 = vsub.f32 %v89, %v101
    %v103 = vsub.f32 %v90, %v101
    %v104 = vmul.f32 %v102, %v102
    %v105 = vmul.f32 %v103, %v103
    %v106 = vadd.f32 %v104, %v105
    %107 = vadd.xlane.f32.xlu0 %v106
    %v108 = vpop.xlane.xlu0 %107
    %v109 = vmul.f32 %v108, 0.003921569
    %v110 = vadd.f32 %v109, 1e-05
    %v111 = vrsqrt.pop %v110
    %v112 = vmul.f32 %v111, %v110
    %v113 = vmul.f32 %v112, %v111
    %v114 = vmul.f32 0.5, %v113
    %v115 = vsub.f32 1.5, %v114
    %v116 = vmul.f32 %v111, %v115
    %vm117 = vweird.f32 %v110
    %vm118 = vweird.f32 %v111
    %vm119 = vmor %vm117, %vm118
    %v120 = vsel %vm119, %v111, %v116
    %v121 = vrsqrt.pop %v110
    %v122 = vmul.f32 %v121, %v110
    %v123 = vmul.f32 %v122, %v121
    %v124 = vmul.f32 0.5, %v123
    %v125 = vsub.f32 1.5, %v124
    %v126 = vmul.f32 %v121, %v125
    %v127 = vmul.f32 %v110, %v126
    %vm128 = vcmp.eq.f32.partialorder %v110, inf
    %v129 = vsel %vm128, %v110, %v127
    %vm130 = vcmp.eq.f32.partialorder %v110, 0.0
    %v131 = vand.u32 %v110, 2147483648
    %v132 = vsel %vm130, %v131, %v129
    %v133 = vmul.f32 %v102, %v120
    %v134 = vmul.f32 %v103, %v120
    %v135 = vld [vmem:[%s3] sm:$0xf]
    %v136 = vpack.c.bf16 %v133, %v133
    %v137 = vpack.c.bf16 %v134, %v134
    %v138 = vld [vmem:[%s4] sm:$0xff]
    %140 = vset.pattern.permute.xlu0 0
    %141 = vperm.xlu0 %140, %v138
    %v142 = vpop.permute.xlu0 %141
    %vm144 = vcmask 64512
    %v146 = vsel %vm144, %v135, 0
    %vm148 = vcmask 1043456
    %v150 = vsel %vm148, %v136, 0
    %v153 = vsel %vm148, %v137, 0
    %155 = vmatpush.bf16.msra.mxu0 0
    %156 = vmatpush.bf16.msra.mxu0 0
    %157 = vmatpush.bf16.msra.mxu0 0
    %158 = vmatpush.bf16.msra.mxu0 0
    %159 = vmatpush.bf16.msra.mxu0 0
    %160 = vmatpush.bf16.msra.mxu0 0
    %161 = vmatpush.bf16.msra.mxu0 0
    %162 = vmatpush.bf16.msra.mxu0 %v150
    %163 = vmatmul.bf16.gmra.mxu0 %v146
    %v164 = vpop.f32.mrf.mxu0
    %v165 = vadd.f32 %v142, %v164
    %v166 = vpop.f32.mrf.mxu0
    %167 = vdwg.mxu0
    %168 = vmatpush.bf16.msra.mxu0 0
    %169 = vmatpush.bf16.msra.mxu0 0
    %170 = vmatpush.bf16.msra.mxu0 0
    %171 = vmatpush.bf16.msra.mxu0 0
    %172 = vmatpush.bf16.msra.mxu0 0
    %173 = vmatpush.bf16.msra.mxu0 0
    %174 = vmatpush.bf16.msra.mxu0 0
    %175 = vmatpush.bf16.msra.mxu0 %v153
    %176 = vmatmul.bf16.gmra.mxu0 %v146
    %v177 = vpop.f32.mrf.mxu0
    %v178 = vadd.f32 %v142, %v177
    %v179 = vpop.f32.mrf.mxu0
    %180 = vdwg.mxu0
    %v181 = vsub.f32 0.0, %v165
    %v182 = vsub.f32 0.0, %v178
    %v183 = vmul.f32 %v181, 1.442695
    %v184 = vpow.pop %v183
    %v185 = vmul.f32 %v182, 1.442695
    %v186 = vpow.pop %v185
    %v187 = vadd.f32 %v184, 1.0
    %v188 = vadd.f32 %v186, 1.0
    %v189 = vrcp.pop %v187
    %v190 = vmul.f32 %v187, %v189
    %v191 = vsub.f32 1.0, %v190
    %v192 = vmul.f32 %v189, %v191
    %v193 = vadd.f32 %v189, %v192
    %vm194 = vweird.f32 %v187
    %vm195 = vweird.f32 %v189
    %vm196 = vmor %vm194, %vm195
    %v197 = vsel %vm196, %v189, %v193
    %v198 = vand.u32 2147483647, %v187
    %vm199 = vcmp.eq.f32.partialorder %v198, 8.507059e+37
    %v200 = vand.u32 %v187, 2147483648
    %v201 = vor.u32 1.1754944e-38, %v200
    %v202 = vsel %vm199, %v201, %v197
    %v203 = vmul.f32 %v165, %v202
    %v204 = vrcp.pop %v188
    %v205 = vmul.f32 %v188, %v204
    %v206 = vsub.f32 1.0, %v205
    %v207 = vmul.f32 %v204, %v206
    %v208 = vadd.f32 %v204, %v207
    %vm209 = vweird.f32 %v188
    %vm210 = vweird.f32 %v204
    %vm211 = vmor %vm209, %vm210
    %v212 = vsel %vm211, %v204, %v208
    %v213 = vand.u32 2147483647, %v188
    %vm214 = vcmp.eq.f32.partialorder %v213, 8.507059e+37
    %v215 = vand.u32 %v188, 2147483648
    %v216 = vor.u32 1.1754944e-38, %v215
    %v217 = vsel %vm214, %v216, %v212
    %v218 = vmul.f32 %v178, %v217
    %v219 = vld [vmem:[%s5] sm:$0xf]
    %v220 = vpack.c.bf16 %v203, %v203
    %v221 = vpack.c.bf16 %v218, %v218
    %222 = vrot.lane.b32.xlu0 %v203, 127
    %v223 = vpop.permute.xlu0 %222
    %224 = vrot.lane.b32.xlu0 %v218, 127
    %v225 = vpop.permute.xlu0 %224
    %v226 = vlaneseq
    %v227 = vand.u32 %v226, 127
    %vm228 = vcmp.lt.s32.totalorder %v227, 127
    %v229 = vsel %vm228, %v223, %v225
    %v230 = vsel %vm228, %v225, %v223
    %s231 = scalar_lea.vmem %s5, 4
    %v232 = vld [vmem:[%s231] sm:$0xf]
    %v233 = vpack.c.bf16 %v229, %v229
    %v234 = vpack.c.bf16 %v230, %v230
    %v236 = vsel %vm144, %v232, 0
    %v239 = vsel %vm148, %v233, 0
    %v242 = vsel %vm148, %v234, 0
    %244 = vmatpush.bf16.msra.mxu0 0
    %245 = vmatpush.bf16.msra.mxu0 0
    %246 = vmatpush.bf16.msra.mxu0 0
    %247 = vmatpush.bf16.msra.mxu0 0
    %248 = vmatpush.bf16.msra.mxu0 0
    %249 = vmatpush.bf16.msra.mxu0 0
    %250 = vmatpush.bf16.msra.mxu0 0
    %251 = vmatpush.bf16.msra.mxu0 %v239
    %252 = vmatmul.bf16.gmra.mxu0 %v236
    %v253 = vpop.f32.mrf.mxu0
    %v254 = vadd.f32 0.0, %v253
    %v255 = vpop.f32.mrf.mxu0
    %256 = vdwg.mxu0
    %257 = vmatpush.bf16.msra.mxu0 0
    %258 = vmatpush.bf16.msra.mxu0 0
    %259 = vmatpush.bf16.msra.mxu0 0
    %260 = vmatpush.bf16.msra.mxu0 0
    %261 = vmatpush.bf16.msra.mxu0 0
    %262 = vmatpush.bf16.msra.mxu0 0
    %263 = vmatpush.bf16.msra.mxu0 0
    %264 = vmatpush.bf16.msra.mxu0 %v242
    %265 = vmatmul.bf16.gmra.mxu0 %v236
    %v266 = vpop.f32.mrf.mxu0
    %v267 = vadd.f32 0.0, %v266
    %v268 = vpop.f32.mrf.mxu0
    %269 = vdwg.mxu0
    %v271 = vsel %vm144, %v219, 0
    %v274 = vsel %vm148, %v220, 0
    %v277 = vsel %vm148, %v221, 0
    %279 = vmatpush.bf16.msra.mxu0 0
    %280 = vmatpush.bf16.msra.mxu0 0
    %281 = vmatpush.bf16.msra.mxu0 0
    %282 = vmatpush.bf16.msra.mxu0 0
    %283 = vmatpush.bf16.msra.mxu0 0
    %284 = vmatpush.bf16.msra.mxu0 0
    %285 = vmatpush.bf16.msra.mxu0 0
    %286 = vmatpush.bf16.msra.mxu0 %v274
    %287 = vmatmul.bf16.gmra.mxu0 %v271
    %v288 = vpop.f32.mrf.mxu0
    %v289 = vadd.f32 %v254, %v288
    %v290 = vpop.f32.mrf.mxu0
    %291 = vdwg.mxu0
    %292 = vmatpush.bf16.msra.mxu0 0
    %293 = vmatpush.bf16.msra.mxu0 0
    %294 = vmatpush.bf16.msra.mxu0 0
    %295 = vmatpush.bf16.msra.mxu0 0
    %296 = vmatpush.bf16.msra.mxu0 0
    %297 = vmatpush.bf16.msra.mxu0 0
    %298 = vmatpush.bf16.msra.mxu0 0
    %299 = vmatpush.bf16.msra.mxu0 %v277
    %300 = vmatmul.bf16.gmra.mxu0 %v271
    %v301 = vpop.f32.mrf.mxu0
    %v302 = vadd.f32 %v267, %v301
    %v303 = vpop.f32.mrf.mxu0
    %304 = vdwg.mxu0
    %305 = vrot.lane.b32.xlu0 %v203, 112
    %v306 = vpop.permute.xlu0 %305
    %307 = vrot.lane.b32.xlu0 %v218, 112
    %v308 = vpop.permute.xlu0 %307
    %vm309 = vcmp.lt.s32.totalorder %v227, 112
    %v310 = vsel %vm309, %v306, %v308
    %v311 = vsel %vm309, %v308, %v306
    %s312 = scalar_lea.vmem %s5, 8
    %v313 = vld [vmem:[%s312] sm:$0xf]
    %v314 = vpack.c.bf16 %v310, %v310
    %v315 = vpack.c.bf16 %v311, %v311
    %v317 = vsel %vm144, %v313, 0
    %v320 = vsel %vm148, %v314, 0
    %v323 = vsel %vm148, %v315, 0
    %325 = vmatpush.bf16.msra.mxu0 0
    %326 = vmatpush.bf16.msra.mxu0 0
    %327 = vmatpush.bf16.msra.mxu0 0
    %328 = vmatpush.bf16.msra.mxu0 0
    %329 = vmatpush.bf16.msra.mxu0 0
    %330 = vmatpush.bf16.msra.mxu0 0
    %331 = vmatpush.bf16.msra.mxu0 0
    %332 = vmatpush.bf16.msra.mxu0 %v320
    %333 = vmatmul.bf16.gmra.mxu0 %v317
    %v334 = vpop.f32.mrf.mxu0
    %v335 = vadd.f32 0.0, %v334
    %v336 = vpop.f32.mrf.mxu0
    %337 = vdwg.mxu0
    %338 = vmatpush.bf16.msra.mxu0 0
    %339 = vmatpush.bf16.msra.mxu0 0
    %340 = vmatpush.bf16.msra.mxu0 0
    %341 = vmatpush.bf16.msra.mxu0 0
    %342 = vmatpush.bf16.msra.mxu0 0
    %343 = vmatpush.bf16.msra.mxu0 0
    %344 = vmatpush.bf16.msra.mxu0 0
    %345 = vmatpush.bf16.msra.mxu0 %v323
    %346 = vmatmul.bf16.gmra.mxu0 %v317
    %v347 = vpop.f32.mrf.mxu0
    %v348 = vadd.f32 0.0, %v347
    %v349 = vpop.f32.mrf.mxu0
    %350 = vdwg.mxu0
    %v351 = vadd.f32 %v289, %v335
    %v352 = vadd.f32 %v302, %v348
    %353 = vrot.lane.b32.xlu0 %v203, 111
    %v354 = vpop.permute.xlu0 %353
    %355 = vrot.lane.b32.xlu0 %v218, 111
    %v356 = vpop.permute.xlu0 %355
    %vm357 = vcmp.lt.s32.totalorder %v227, 111
    %v358 = vsel %vm357, %v354, %v356
    %v359 = vsel %vm357, %v356, %v354
    %s360 = scalar_lea.vmem %s5, 12
    %v361 = vld [vmem:[%s360] sm:$0xf]
    %v362 = vpack.c.bf16 %v358, %v358
    %v363 = vpack.c.bf16 %v359, %v359
    %v365 = vsel %vm144, %v361, 0
    %v368 = vsel %vm148, %v362, 0
    %v371 = vsel %vm148, %v363, 0
    %373 = vmatpush.bf16.msra.mxu0 0
    %374 = vmatpush.bf16.msra.mxu0 0
    %375 = vmatpush.bf16.msra.mxu0 0
    %376 = vmatpush.bf16.msra.mxu0 0
    %377 = vmatpush.bf16.msra.mxu0 0
    %378 = vmatpush.bf16.msra.mxu0 0
    %379 = vmatpush.bf16.msra.mxu0 0
    %380 = vmatpush.bf16.msra.mxu0 %v368
    %381 = vmatmul.bf16.gmra.mxu0 %v365
    %v382 = vpop.f32.mrf.mxu0
    %v383 = vadd.f32 0.0, %v382
    %v384 = vpop.f32.mrf.mxu0
    %385 = vdwg.mxu0
    %386 = vmatpush.bf16.msra.mxu0 0
    %387 = vmatpush.bf16.msra.mxu0 0
    %388 = vmatpush.bf16.msra.mxu0 0
    %389 = vmatpush.bf16.msra.mxu0 0
    %390 = vmatpush.bf16.msra.mxu0 0
    %391 = vmatpush.bf16.msra.mxu0 0
    %392 = vmatpush.bf16.msra.mxu0 0
    %393 = vmatpush.bf16.msra.mxu0 %v371
    %394 = vmatmul.bf16.gmra.mxu0 %v365
    %v395 = vpop.f32.mrf.mxu0
    %v396 = vadd.f32 0.0, %v395
    %v397 = vpop.f32.mrf.mxu0
    %398 = vdwg.mxu0
    %v399 = vadd.f32 %v351, %v383
    %v400 = vadd.f32 %v352, %v396
    %v401 = vld [vmem:[%s6] sm:$0xff]
    %403 = vset.pattern.permute.xlu0 0
    %404 = vperm.xlu0 %403, %v401
    %v405 = vpop.permute.xlu0 %404
    %v407 = vadd.f32 %v399, %v405
    %v408 = vadd.f32 %v400, %v405
    %v409 = vsub.f32 0.0, %v407
    %v410 = vsub.f32 0.0, %v408
    %v411 = vmul.f32 %v409, 1.442695
    %v412 = vpow.pop %v411
    %v413 = vmul.f32 %v410, 1.442695
    %v414 = vpow.pop %v413
    %v415 = vadd.f32 %v412, 1.0
    %v416 = vadd.f32 %v414, 1.0
    %v417 = vrcp.pop %v415
    %v418 = vmul.f32 %v415, %v417
    %v419 = vsub.f32 1.0, %v418
    %v420 = vmul.f32 %v417, %v419
    %v421 = vadd.f32 %v417, %v420
    %vm422 = vweird.f32 %v415
    %vm423 = vweird.f32 %v417
    %vm424 = vmor %vm422, %vm423
    %v425 = vsel %vm424, %v417, %v421
    %v426 = vand.u32 2147483647, %v415
    %vm427 = vcmp.eq.f32.partialorder %v426, 8.507059e+37
    %v428 = vand.u32 %v415, 2147483648
    %v429 = vor.u32 1.1754944e-38, %v428
    %v430 = vsel %vm427, %v429, %v425
    %v431 = vmul.f32 %v407, %v430
    %v432 = vrcp.pop %v416
    %v433 = vmul.f32 %v416, %v432
    %v434 = vsub.f32 1.0, %v433
    %v435 = vmul.f32 %v432, %v434
    %v436 = vadd.f32 %v432, %v435
    %vm437 = vweird.f32 %v416
    %vm438 = vweird.f32 %v432
    %vm439 = vmor %vm437, %vm438
    %v440 = vsel %vm439, %v432, %v436
    %v441 = vand.u32 2147483647, %v416
    %vm442 = vcmp.eq.f32.partialorder %v441, 8.507059e+37
    %v443 = vand.u32 %v416, 2147483648
    %v444 = vor.u32 1.1754944e-38, %v443
    %v445 = vsel %vm442, %v444, %v440
    %v446 = vmul.f32 %v408, %v445
    %v447 = vld [vmem:[%s7] sm:$0xf]
    %v448 = vpack.c.bf16 %v431, %v431
    %v449 = vpack.c.bf16 %v446, %v446
    %v450 = vld [vmem:[%s8] sm:$0xff]
    %452 = vset.pattern.permute.xlu0 0
    %453 = vperm.xlu0 %452, %v450
    %v454 = vpop.permute.xlu0 %453
    %v457 = vsel %vm144, %v447, 0
    %v460 = vsel %vm148, %v448, 0
    %v463 = vsel %vm148, %v449, 0
    %465 = vmatpush.bf16.msra.mxu0 0
    %466 = vmatpush.bf16.msra.mxu0 0
    %467 = vmatpush.bf16.msra.mxu0 0
    %468 = vmatpush.bf16.msra.mxu0 0
    %469 = vmatpush.bf16.msra.mxu0 0
    %470 = vmatpush.bf16.msra.mxu0 0
    %471 = vmatpush.bf16.msra.mxu0 0
    %472 = vmatpush.bf16.msra.mxu0 %v460
    %473 = vmatmul.bf16.gmra.mxu0 %v457
    %v474 = vpop.f32.mrf.mxu0
    %v475 = vadd.f32 %v454, %v474
    %v476 = vpop.f32.mrf.mxu0
    %477 = vdwg.mxu0
    %478 = vmatpush.bf16.msra.mxu0 0
    %479 = vmatpush.bf16.msra.mxu0 0
    %480 = vmatpush.bf16.msra.mxu0 0
    %481 = vmatpush.bf16.msra.mxu0 0
    %482 = vmatpush.bf16.msra.mxu0 0
    %483 = vmatpush.bf16.msra.mxu0 0
    %484 = vmatpush.bf16.msra.mxu0 0
    %485 = vmatpush.bf16.msra.mxu0 %v463
    %486 = vmatmul.bf16.gmra.mxu0 %v457
    %v487 = vpop.f32.mrf.mxu0
    %v488 = vadd.f32 %v454, %v487
    %v489 = vpop.f32.mrf.mxu0
    %490 = vdwg.mxu0
    %vm491 = vcmp.gt.f32.partialorder %v475, 0.0
    %vm492 = vcmp.gt.f32.partialorder %v488, 0.0
    %vm493 = vcmp.lt.f32.partialorder %v475, 0.0
    %vm494 = vcmp.lt.f32.partialorder %v488, 0.0
    %v495 = vsel %vm493, -1.0, 0.0
    %v496 = vsel %vm494, -1.0, 0.0
    %v497 = vsel %vm491, 1.0, %v495
    %v498 = vsel %vm492, 1.0, %v496
    %v499 = vld [vmem:[#allocation5] sm:$0x3]
    %v501 = vperm.slane %v499, 0
    %v502 = vperm.slane %v499, 1
    %v505 = vmul.f32 %v497, %v501
    %v506 = vmul.f32 %v498, %v502
    %v507 = vld [vmem:[#allocation7] sm:$0xf]
    %v508 = vpack.c.bf16 %v505, %v505
    %v509 = vpack.c.bf16 %v506, %v506
    %510 = vrot.lane.b32.xlu0 %v505, 1
    %v511 = vpop.permute.xlu0 %510
    %512 = vrot.lane.b32.xlu0 %v506, 1
    %v513 = vpop.permute.xlu0 %512
    %vm514 = vcmp.lt.s32.totalorder %v227, 1
    %v515 = vsel %vm514, %v511, %v513
    %v516 = vsel %vm514, %v513, %v511
    %s517 = scalar_lea.vmem [#allocation7], 4
    %v518 = vld [vmem:[%s517] sm:$0xf]
    %v519 = vpack.c.bf16 %v516, %v516
    %v520 = vpack.c.bf16 %v515, %v515
    %v522 = vsel %vm144, %v518, 0
    %v525 = vsel %vm148, %v519, 0
    %v528 = vsel %vm148, %v520, 0
    %530 = vmatpush.bf16.msra.mxu0 0
    %531 = vmatpush.bf16.msra.mxu0 0
    %532 = vmatpush.bf16.msra.mxu0 0
    %533 = vmatpush.bf16.msra.mxu0 0
    %534 = vmatpush.bf16.msra.mxu0 0
    %535 = vmatpush.bf16.msra.mxu0 0
    %536 = vmatpush.bf16.msra.mxu0 0
    %537 = vmatpush.bf16.msra.mxu0 %v525
    %538 = vmatmul.bf16.gmra.mxu0 %v522
    %v539 = vpop.f32.mrf.mxu0
    %v540 = vadd.f32 0.0, %v539
    %v541 = vpop.f32.mrf.mxu0
    %542 = vdwg.mxu0
    %543 = vmatpush.bf16.msra.mxu0 0
    %544 = vmatpush.bf16.msra.mxu0 0
    %545 = vmatpush.bf16.msra.mxu0 0
    %546 = vmatpush.bf16.msra.mxu0 0
    %547 = vmatpush.bf16.msra.mxu0 0
    %548 = vmatpush.bf16.msra.mxu0 0
    %549 = vmatpush.bf16.msra.mxu0 0
    %550 = vmatpush.bf16.msra.mxu0 %v528
    %551 = vmatmul.bf16.gmra.mxu0 %v522
    %v552 = vpop.f32.mrf.mxu0
    %v553 = vadd.f32 0.0, %v552
    %v554 = vpop.f32.mrf.mxu0
    %555 = vdwg.mxu0
    %v557 = vsel %vm144, %v507, 0
    %v560 = vsel %vm148, %v508, 0
    %v563 = vsel %vm148, %v509, 0
    %565 = vmatpush.bf16.msra.mxu0 0
    %566 = vmatpush.bf16.msra.mxu0 0
    %567 = vmatpush.bf16.msra.mxu0 0
    %568 = vmatpush.bf16.msra.mxu0 0
    %569 = vmatpush.bf16.msra.mxu0 0
    %570 = vmatpush.bf16.msra.mxu0 0
    %571 = vmatpush.bf16.msra.mxu0 0
    %572 = vmatpush.bf16.msra.mxu0 %v560
    %573 = vmatmul.bf16.gmra.mxu0 %v557
    %v574 = vpop.f32.mrf.mxu0
    %v575 = vadd.f32 %v540, %v574
    %v576 = vpop.f32.mrf.mxu0
    %577 = vdwg.mxu0
    %578 = vmatpush.bf16.msra.mxu0 0
    %579 = vmatpush.bf16.msra.mxu0 0
    %580 = vmatpush.bf16.msra.mxu0 0
    %581 = vmatpush.bf16.msra.mxu0 0
    %582 = vmatpush.bf16.msra.mxu0 0
    %583 = vmatpush.bf16.msra.mxu0 0
    %584 = vmatpush.bf16.msra.mxu0 0
    %585 = vmatpush.bf16.msra.mxu0 %v563
    %586 = vmatmul.bf16.gmra.mxu0 %v557
    %v587 = vpop.f32.mrf.mxu0
    %v588 = vadd.f32 %v553, %v587
    %v589 = vpop.f32.mrf.mxu0
    %590 = vdwg.mxu0
    %591 = vrot.lane.b32.xlu0 %v505, 16
    %v592 = vpop.permute.xlu0 %591
    %593 = vrot.lane.b32.xlu0 %v506, 16
    %v594 = vpop.permute.xlu0 %593
    %vm595 = vcmp.lt.s32.totalorder %v227, 16
    %v596 = vsel %vm595, %v592, %v594
    %v597 = vsel %vm595, %v594, %v592
    %s598 = scalar_lea.vmem [#allocation7], 8
    %v599 = vld [vmem:[%s598] sm:$0xf]
    %v600 = vpack.c.bf16 %v597, %v597
    %v601 = vpack.c.bf16 %v596, %v596
    %v603 = vsel %vm144, %v599, 0
    %v606 = vsel %vm148, %v600, 0
    %v609 = vsel %vm148, %v601, 0
    %611 = vmatpush.bf16.msra.mxu0 0
    %612 = vmatpush.bf16.msra.mxu0 0
    %613 = vmatpush.bf16.msra.mxu0 0
    %614 = vmatpush.bf16.msra.mxu0 0
    %615 = vmatpush.bf16.msra.mxu0 0
    %616 = vmatpush.bf16.msra.mxu0 0
    %617 = vmatpush.bf16.msra.mxu0 0
    %618 = vmatpush.bf16.msra.mxu0 %v606
    %619 = vmatmul.bf16.gmra.mxu0 %v603
    %v620 = vpop.f32.mrf.mxu0
    %v621 = vadd.f32 0.0, %v620
    %v622 = vpop.f32.mrf.mxu0
    %623 = vdwg.mxu0
    %624 = vmatpush.bf16.msra.mxu0 0
    %625 = vmatpush.bf16.msra.mxu0 0
    %626 = vmatpush.bf16.msra.mxu0 0
    %627 = vmatpush.bf16.msra.mxu0 0
    %628 = vmatpush.bf16.msra.mxu0 0
    %629 = vmatpush.bf16.msra.mxu0 0
    %630 = vmatpush.bf16.msra.mxu0 0
    %631 = vmatpush.bf16.msra.mxu0 %v609
    %632 = vmatmul.bf16.gmra.mxu0 %v603
    %v633 = vpop.f32.mrf.mxu0
    %v634 = vadd.f32 0.0, %v633
    %v635 = vpop.f32.mrf.mxu0
    %636 = vdwg.mxu0
    %v637 = vadd.f32 %v575, %v621
    %v638 = vadd.f32 %v588, %v634
    %639 = vrot.lane.b32.xlu0 %v505, 17
    %v640 = vpop.permute.xlu0 %639
    %641 = vrot.lane.b32.xlu0 %v506, 17
    %v642 = vpop.permute.xlu0 %641
    %vm643 = vcmp.lt.s32.totalorder %v227, 17
    %v644 = vsel %vm643, %v640, %v642
    %v645 = vsel %vm643, %v642, %v640
    %s646 = scalar_lea.vmem [#allocation7], 12
    %v647 = vld [vmem:[%s646] sm:$0xf]
    %v648 = vpack.c.bf16 %v645, %v645
    %v649 = vpack.c.bf16 %v644, %v644
    %v651 = vsel %vm144, %v647, 0
    %v654 = vsel %vm148, %v648, 0
    %v657 = vsel %vm148, %v649, 0
    %659 = vmatpush.bf16.msra.mxu0 0
    %660 = vmatpush.bf16.msra.mxu0 0
    %661 = vmatpush.bf16.msra.mxu0 0
    %662 = vmatpush.bf16.msra.mxu0 0
    %663 = vmatpush.bf16.msra.mxu0 0
    %664 = vmatpush.bf16.msra.mxu0 0
    %665 = vmatpush.bf16.msra.mxu0 0
    %666 = vmatpush.bf16.msra.mxu0 %v654
    %667 = vmatmul.bf16.gmra.mxu0 %v651
    %v668 = vpop.f32.mrf.mxu0
    %v669 = vadd.f32 0.0, %v668
    %v670 = vpop.f32.mrf.mxu0
    %671 = vdwg.mxu0
    %672 = vmatpush.bf16.msra.mxu0 0
    %673 = vmatpush.bf16.msra.mxu0 0
    %674 = vmatpush.bf16.msra.mxu0 0
    %675 = vmatpush.bf16.msra.mxu0 0
    %676 = vmatpush.bf16.msra.mxu0 0
    %677 = vmatpush.bf16.msra.mxu0 0
    %678 = vmatpush.bf16.msra.mxu0 0
    %679 = vmatpush.bf16.msra.mxu0 %v657
    %680 = vmatmul.bf16.gmra.mxu0 %v651
    %v681 = vpop.f32.mrf.mxu0
    %v682 = vadd.f32 0.0, %v681
    %v683 = vpop.f32.mrf.mxu0
    %684 = vdwg.mxu0
    %v685 = vadd.f32 %v637, %v669
    %v686 = vadd.f32 %v638, %v682
    %v687 = vld [vmem:[%s10] sm:$0xff]
    %689 = vset.pattern.permute.xlu0 0
    %690 = vperm.xlu0 %689, %v687
    %v691 = vpop.permute.xlu0 %690
    %v693 = vadd.f32 %v685, %v691
    %v694 = vadd.f32 %v686, %v691
    %v695 = vsub.f32 0.0, %v693
    %v696 = vsub.f32 0.0, %v694
    %v697 = vmul.f32 %v695, 1.442695
    %v698 = vpow.pop %v697
    %v699 = vmul.f32 %v696, 1.442695
    %v700 = vpow.pop %v699
    %v701 = vadd.f32 %v698, 1.0
    %v702 = vadd.f32 %v700, 1.0
    %v703 = vrcp.pop %v701
    %v704 = vmul.f32 %v701, %v703
    %v705 = vsub.f32 1.0, %v704
    %v706 = vmul.f32 %v703, %v705
    %v707 = vadd.f32 %v703, %v706
    %vm708 = vweird.f32 %v701
    %vm709 = vweird.f32 %v703
    %vm710 = vmor %vm708, %vm709
    %v711 = vsel %vm710, %v703, %v707
    %v712 = vand.u32 2147483647, %v701
    %vm713 = vcmp.eq.f32.partialorder %v712, 8.507059e+37
    %v714 = vand.u32 %v701, 2147483648
    %v715 = vor.u32 1.1754944e-38, %v714
    %v716 = vsel %vm713, %v715, %v711
    %v717 = vmul.f32 %v693, %v716
    %v718 = vrcp.pop %v702
    %v719 = vmul.f32 %v702, %v718
    %v720 = vsub.f32 1.0, %v719
    %v721 = vmul.f32 %v718, %v720
    %v722 = vadd.f32 %v718, %v721
    %vm723 = vweird.f32 %v702
    %vm724 = vweird.f32 %v718
    %vm725 = vmor %vm723, %vm724
    %v726 = vsel %vm725, %v718, %v722
    %v727 = vand.u32 2147483647, %v702
    %vm728 = vcmp.eq.f32.partialorder %v727, 8.507059e+37
    %v729 = vand.u32 %v702, 2147483648
    %v730 = vor.u32 1.1754944e-38, %v729
    %v731 = vsel %vm728, %v730, %v726
    %v732 = vmul.f32 %v694, %v731
    %v733 = vld [vmem:[%s11] sm:$0xf]
    %v734 = vpack.c.bf16 %v717, %v717
    %v735 = vpack.c.bf16 %v732, %v732
    %v736 = vld [vmem:[%s12] sm:$0xff]
    %738 = vset.pattern.permute.xlu0 0
    %739 = vperm.xlu0 %738, %v736
    %v740 = vpop.permute.xlu0 %739
    %v743 = vsel %vm144, %v733, 0
    %v746 = vsel %vm148, %v734, 0
    %v749 = vsel %vm148, %v735, 0
    %751 = vmatpush.bf16.msra.mxu0 0
    %752 = vmatpush.bf16.msra.mxu0 0
    %753 = vmatpush.bf16.msra.mxu0 0
    %754 = vmatpush.bf16.msra.mxu0 0
    %755 = vmatpush.bf16.msra.mxu0 0
    %756 = vmatpush.bf16.msra.mxu0 0
    %757 = vmatpush.bf16.msra.mxu0 0
    %758 = vmatpush.bf16.msra.mxu0 %v746
    %759 = vmatmul.bf16.gmra.mxu0 %v743
    %v760 = vpop.f32.mrf.mxu0
    %v761 = vadd.f32 %v740, %v760
    %v762 = vpop.f32.mrf.mxu0
    %763 = vdwg.mxu0
    %764 = vmatpush.bf16.msra.mxu0 0
    %765 = vmatpush.bf16.msra.mxu0 0
    %766 = vmatpush.bf16.msra.mxu0 0
    %767 = vmatpush.bf16.msra.mxu0 0
    %768 = vmatpush.bf16.msra.mxu0 0
    %769 = vmatpush.bf16.msra.mxu0 0
    %770 = vmatpush.bf16.msra.mxu0 0
    %771 = vmatpush.bf16.msra.mxu0 %v749
    %772 = vmatmul.bf16.gmra.mxu0 %v743
    %v773 = vpop.f32.mrf.mxu0
    %v774 = vadd.f32 %v740, %v773
    %v775 = vpop.f32.mrf.mxu0
    %776 = vdwg.mxu0
    %v777 = vsub.f32 0.0, %v761
    %v778 = vsub.f32 0.0, %v774
    %v779 = vmul.f32 %v777, 1.442695
    %v780 = vpow.pop %v779
    %v781 = vmul.f32 %v778, 1.442695
    %v782 = vpow.pop %v781
    %v783 = vadd.f32 %v780, 1.0
    %v784 = vadd.f32 %v782, 1.0
    %v785 = vrcp.pop %v783
    %v786 = vmul.f32 %v783, %v785
    %v787 = vsub.f32 1.0, %v786
    %v788 = vmul.f32 %v785, %v787
    %v789 = vadd.f32 %v785, %v788
    %vm790 = vweird.f32 %v783
    %vm791 = vweird.f32 %v785
    %vm792 = vmor %vm790, %vm791
    %v793 = vsel %vm792, %v785, %v789
    %v794 = vand.u32 2147483647, %v783
    %vm795 = vcmp.eq.f32.partialorder %v794, 8.507059e+37
    %v796 = vand.u32 %v783, 2147483648
    %v797 = vor.u32 1.1754944e-38, %v796
    %v798 = vsel %vm795, %v797, %v793
    %v799 = vmul.f32 %v761, %v798
    %v800 = vrcp.pop %v784
    %v801 = vmul.f32 %v784, %v800
    %v802 = vsub.f32 1.0, %v801
    %v803 = vmul.f32 %v800, %v802
    %v804 = vadd.f32 %v800, %v803
    %vm805 = vweird.f32 %v784
    %vm806 = vweird.f32 %v800
    %vm807 = vmor %vm805, %vm806
    %v808 = vsel %vm807, %v800, %v804
    %v809 = vand.u32 2147483647, %v784
    %vm810 = vcmp.eq.f32.partialorder %v809, 8.507059e+37
    %v811 = vand.u32 %v784, 2147483648
    %v812 = vor.u32 1.1754944e-38, %v811
    %v813 = vsel %vm810, %v812, %v808
    %v814 = vmul.f32 %v774, %v813
    %v815 = vadd.f32 %v799, %v814
    %816 = vadd.xlane.f32.xlu0 %v815
    %v817 = vpop.xlane.xlu0 %816
    %v818 = vmul.f32 %v817, %v100
    %v819 = vsub.f32 %v799, %v818
    %v820 = vsub.f32 %v814, %v818
    %v821 = vmul.f32 %v819, %v819
    %v822 = vmul.f32 %v820, %v820
    %v823 = vadd.f32 %v821, %v822
    %824 = vadd.xlane.f32.xlu0 %v823
    %v825 = vpop.xlane.xlu0 %824
    %v826 = vmul.f32 %v825, 0.003921569
    %v827 = vadd.f32 %v826, 1e-05
    %v828 = vrsqrt.pop %v827
    %v829 = vmul.f32 %v828, %v827
    %v830 = vmul.f32 %v829, %v828
    %v831 = vmul.f32 0.5, %v830
    %v832 = vsub.f32 1.5, %v831
    %v833 = vmul.f32 %v828, %v832
    %vm834 = vweird.f32 %v827
    %vm835 = vweird.f32 %v828
    %vm836 = vmor %vm834, %vm835
    %v837 = vsel %vm836, %v828, %v833
    %v838 = vmul.f32 %v819, %v837
    %v839 = vmul.f32 %v820, %v837
    %v840 = vmul.f32 %v838, %v132
    %v841 = vmul.f32 %v839, %v132
    %v842 = vadd.f32 %v840, %v101
    %v843 = vadd.f32 %v841, %v101
    %844 = vst [vmem:[#allocation8] sm:$0xff] %v842
    %845 = vst [vmem:[#allocation8 + $0x8] sm:$0xff] %v843
    // Predicated region
    $region66: #{tpu_custom_call.1} parent=1 // pred_check
      _
    $region67: #{tpu_custom_call.1} parent=1 // pred_check_branch
      %847 = sbr.rel (0) target = $region69
    $region68: #{tpu_custom_call.1} parent=1 // pred_region
      %849 = vsyncadd [#allocation4], 0
      %s851 = sshll.u32 [#allocation8], 4
      %s852 = int_to_ptr.vmem [resolvable:$true] %s851
      %s853 = sshll.u32 %s13, 4
      %s854 = int_to_ptr.hbm [resolvable:$true] %s853
      %856 = dma.vmem_to_hbm [thread:$0]  %s852, 256, %s854, [#allocation4]
    $region69: #{tpu_custom_call.1} parent=1 // pred_fallthru
      _
    // Predicated region
    $region70: #{tpu_custom_call.1} parent=1 // pred_check
      _
    $region71: #{tpu_custom_call.1} parent=1 // pred_check_branch
      %858 = sbr.rel (0) target = $region73
    $region72: #{tpu_custom_call.1} parent=1 // pred_region
      %860 = dma.done [#allocation4], 256
    $region73: #{tpu_custom_call.1} parent=1 // pred_fallthru
      _
    %861 = vsyncpa [#allocation3], 1
    %862 = vsyncpa [#allocation6], 1
    %863 = vsyncpa [#allocation4], 1

</llo_original>
